<compile_context>
chip_gen: v5e
topology: v5e:2x2
jax: 0.10.0
libtpu: 0.0.40
codegen_flags: <defaults>
</compile_context>

<pallas_src>
import functools

import numpy as np
import jax
import jax.numpy as jnp
from jax.experimental import pallas as pl
from jax.experimental.pallas import tpu as pltpu

KSIZE = 7
PAD = 3
EPS = 1e-5
NEG_SLOPE = 0.01  # nn.LeakyReLU() default


# ---------------------------------------------------------------------------
# Kernel 1: BN batch statistics -- tiled reduction over (N, H-strips) with a
# resident (2, Kp) accumulator (row 0 = per-lane sum, row 1 = per-lane sum(x^2)).
# ---------------------------------------------------------------------------
def bn_stats_kernel(x_ref, out_ref):
    # x_ref:   (1, 1, Ht+2*PAD, Kp)  bf16 halo'd strip; only interior rows summed
    # out_ref: (2, Kp)               f32 resident accumulator
    @pl.when((pl.program_id(0) == 0) & (pl.program_id(1) == 0))
    def _():
        out_ref[...] = jnp.zeros_like(out_ref)

    ht = x_ref.shape[2] - 2 * PAD
    x = x_ref[0, 0, PAD:PAD + ht, :].astype(jnp.float32)       # f32 accumulation
    s = jnp.sum(x, axis=0, keepdims=True)
    ss = jnp.sum(x * x, axis=0, keepdims=True)
    out_ref[...] += jnp.concatenate([s, ss], axis=0)
    # TODO(synk): for very large N*H*W use a mean-offset / Welford-style combine
    #             instead of E[x^2]-E[x]^2 to avoid catastrophic cancellation.


# ---------------------------------------------------------------------------
# Kernel 2: fused BN affine + 7x7 conv (7 lane-dense Toeplitz dots) + bias +
# LeakyReLU; one H-strip per grid step, no scratch, no relayouts.
# ---------------------------------------------------------------------------
def conv_block_kernel(x_ref, scale_ref, shift_ref, t_ref, bias_ref, o_ref, *,
                      h_total):
    # x_ref:     (1, 1, Ht+2*PAD, Kp)  bf16 W-/lane-padded strip incl. H halo rows
    # scale_ref: (1, Kp)        f32 per-lane BN scale (0 in pad lanes)
    # shift_ref: (1, Kp)        f32 per-lane BN shift (0 in pad lanes)
    # t_ref:     (7, Kp, W*Cout) bf16 block-Toeplitz weight slabs (one per kh)
    # bias_ref:  (1, W*Cout)    f32 conv bias tiled over W
    # o_ref:     (1, Ht, W*Cout) f32 lane-dense output strip
    ht = o_ref.shape[1]
    rows = x_ref.shape[2]                    # Ht + 2*PAD

    # BN affine in f32.  Rows belonging to the *global* H padding must stay
    # exactly zero (padding is applied after BN), so mask them with a VPU select.
    xs = x_ref[0, 0].astype(jnp.float32) * scale_ref[...] + shift_ref[...]
    r0 = pl.program_id(1) * ht               # padded-frame index of strip row 0
    ridx = r0 + jax.lax.broadcasted_iota(jnp.int32, (rows, 1), 0)
    valid = (ridx >= PAD) & (ridx < PAD + h_total)
    xs = jnp.where(valid, xs, 0.0).astype(jnp.bfloat16)        # (rows, Kp)

    # 7 lane-dense MXU contractions with f32 accumulation: t_ref[kh] already
    # folds the kw taps and the W output axis, so each dot is
    # (Ht, Kp) x (Kp, W*Cout) straight into the lane-dense output layout.
    acc = jnp.dot(xs[0:ht, :], t_ref[0], preferred_element_type=jnp.float32)
    for kh in range(1, KSIZE):
        acc = acc + jnp.dot(xs[kh:kh + ht, :], t_ref[kh],
                            preferred_element_type=jnp.float32)

    out = acc + bias_ref[...]
    o_ref[0] = jnp.where(out > 0, out, NEG_SLOPE * out).astype(o_ref.dtype)


# ---------------------------------------------------------------------------
# Wrapper (plain-JAX glue: layout prep, Toeplitz weight build, BN params)
# ---------------------------------------------------------------------------
def conv_block_forward(x_nchw, gamma, beta, conv_w, conv_b, *, h_tile=8):
    N, Cin, H, W = x_nchw.shape
    Cout = conv_w.shape[0]
    Wp = W + 2 * PAD

    h_tile = min(h_tile, H)
    if H % h_tile != 0:
        # TODO(synk): support ragged final strips (pad H in the wrapper).
        raise ValueError("H must be divisible by h_tile")
    n_ht = H // h_tile

    kcols = Wp * Cin
    kpad = ((kcols + 127) // 128) * 128      # lane-pad K to a multiple of 128
    nout = W * Cout

    # ---- layout prep: NCHW -> (N, n_ht, Ht+6, Kp) bf16 halo'd strips --------
    x_nhwc = jnp.transpose(x_nchw, (0, 2, 3, 1)).astype(jnp.float32)   # (N,H,W,Cin)
    x_wpad = jnp.pad(x_nhwc, ((0, 0), (0, 0), (PAD, PAD), (0, 0)))     # (N,H,Wp,Cin)
    x_cols = x_wpad.reshape(N, H, kcols)
    x_cols = jnp.pad(x_cols, ((0, 0), (0, 0), (0, kpad - kcols)))      # (N,H,Kp)
    x_hpad = jnp.pad(x_cols, ((0, 0), (PAD, PAD), (0, 0)))             # (N,H+6,Kp)
    # TODO(synk): for large H replace wrapper halo replication with
    #             memory_space=pl.ANY + manual pltpu.make_async_copy of the
    #             [t*Ht-3, t*Ht+Ht+3) row window (BlockSpec cannot overlap blocks).
    strips = jnp.stack(
        [x_hpad[:, t * h_tile: t * h_tile + h_tile + 2 * PAD, :]
         for t in range(n_ht)],
        axis=1).astype(jnp.bfloat16)                      # (N, n_ht, Ht+6, Kp)

    # ---- BN batch statistics: tiled Pallas reduction ------------------------
    stats = pl.pallas_call(
        bn_stats_kernel,
        out_shape=jax.ShapeDtypeStruct((2, kpad), jnp.float32),
        grid=(N, n_ht),
        in_specs=[pl.BlockSpec((1, 1, h_tile + 2 * PAD, kpad),
                               lambda n, t: (n, t, 0, 0))],
        out_specs=pl.BlockSpec((2, kpad), lambda n, t: (0, 0)),
        compiler_params=pltpu.CompilerParams(
            dimension_semantics=("arbitrary", "arbitrary")),
    )(strips)

    cnt = float(N * H * W)
    sums = stats[:, :kcols].reshape(2, Wp, Cin).sum(axis=1)   # pad columns are 0
    mean = sums[0] / cnt
    var = jnp.maximum(sums[1] / cnt - mean * mean, 0.0)       # biased (train mode)
    a = gamma.astype(jnp.float32) * jax.lax.rsqrt(var + EPS)  # BN scale
    b = beta.astype(jnp.float32) - mean * a                   # BN shift

    # Per-lane BN affine over the packed/padded column layout.  Scale & shift are
    # forced to 0 in W-pad / lane-pad columns so padding stays exact zero post-BN
    # (zero padding happens *after* BN in the module).
    wmask = np.zeros((Wp, 1), np.float32)
    wmask[PAD:PAD + W] = 1.0
    wmask = jnp.asarray(wmask)
    a_cols = (wmask * a[None, :]).reshape(kcols)
    b_cols = (wmask * b[None, :]).reshape(kcols)
    scale_row = jnp.pad(a_cols, (0, kpad - kcols))[None, :]            # (1, Kp)
    shift_row = jnp.pad(b_cols, (0, kpad - kcols))[None, :]            # (1, Kp)
    bias_row = jnp.tile(conv_b.astype(jnp.float32), W)[None, :]        # (1, W*Cout)

    # ---- block-Toeplitz weights: fold (kw, W) into one (Kp, W*Cout) slab/kh --
    # T[kh, w_in*Cin+ci, w_out*Cout+co] = conv_w[co, ci, kh, w_in - w_out]
    #   (zero unless 0 <= w_in - w_out < 7)
    w_hwio = jnp.transpose(conv_w, (2, 3, 1, 0)).astype(jnp.float32)   # (7,7,Cin,Cout)
    sel = np.zeros((KSIZE, W, Wp), np.float32)
    for kw in range(KSIZE):
        for wo in range(W):
            sel[kw, wo, wo + kw] = 1.0
    toep = jnp.einsum("koi,hkcd->hicod", jnp.asarray(sel), w_hwio)     # (7,Wp,Cin,W,Cout)
    toep = toep.reshape(KSIZE, kcols, nout)
    toep = jnp.pad(toep, ((0, 0), (0, kpad - kcols), (0, 0))).astype(jnp.bfloat16)
    # TODO(synk): the Toeplitz slab is O(W^2*Cin*Cout); for large W/Cin revert to
    #             a lane-dense blocked im2col with W/Cout tiling instead.

    # ---- fused BN affine + conv + bias + LeakyReLU ---------------------------
    kernel = functools.partial(conv_block_kernel, h_total=H)
    y2d = pl.pallas_call(
        kernel,
        out_shape=jax.ShapeDtypeStruct((N, H, nout), jnp.float32),
        grid=(N, n_ht),
        in_specs=[
            pl.BlockSpec((1, 1, h_tile + 2 * PAD, kpad), lambda n, t: (n, t, 0, 0)),
            pl.BlockSpec((1, kpad), lambda n, t: (0, 0)),
            pl.BlockSpec((1, kpad), lambda n, t: (0, 0)),
            pl.BlockSpec((KSIZE, kpad, nout), lambda n, t: (0, 0, 0)),
            pl.BlockSpec((1, nout), lambda n, t: (0, 0)),
        ],
        out_specs=pl.BlockSpec((1, h_tile, nout), lambda n, t: (n, t, 0)),
        compiler_params=pltpu.CompilerParams(
            # Both axes parallel: even at N=1 the H-strip axis keeps both v7x
            # TensorCores busy.  VMEM use here is tiny; limit kept below v7x's
            # 64 MiB physical budget.
            dimension_semantics=("parallel", "parallel"),
            vmem_limit_bytes=48 * 1024 * 1024),
    )(strips, scale_row, shift_row, toep, bias_row)

    # (N, H, W*Cout) -> (N, H, W, Cout) -> NCHW
    return jnp.transpose(y2d.reshape(N, H, W, Cout), (0, 3, 1, 2))


# ---------------------------------------------------------------------------
# Pure-JAX reference (for correctness check)
# ---------------------------------------------------------------------------
def reference(x, gamma, beta, conv_w, conv_b):
    mean = jnp.mean(x, axis=(0, 2, 3), keepdims=True)
    var = jnp.var(x, axis=(0, 2, 3), keepdims=True)
    xh = ((x - mean) / jnp.sqrt(var + EPS)) * gamma[None, :, None, None] \
         + beta[None, :, None, None]
    y = jax.lax.conv_general_dilated(
        xh, conv_w, window_strides=(1, 1),
        padding=((PAD, PAD), (PAD, PAD)),
        dimension_numbers=("NCHW", "OIHW", "NCHW"))
    y = y + conv_b[None, :, None, None]
    return jnp.where(y > 0, y, NEG_SLOPE * y)


if __name__ == "__main__":
    key = jax.random.PRNGKey(0)
    k1, k2, k3 = jax.random.split(key, 3)

    N, Cin, Cout, H, W = 2, 4, 8, 16, 16
    x = jax.random.normal(k1, (N, Cin, H, W), jnp.float32)

    # Deterministic parameter init (shapes match nn.BatchNorm2d / nn.Conv2d).
    gamma = jnp.ones((Cin,), jnp.float32)            # BN weight
    beta = jnp.zeros((Cin,), jnp.float32)            # BN bias
    fan_in = Cin * KSIZE * KSIZE
    bound = 1.0 / np.sqrt(fan_in)
    conv_w = jax.random.uniform(k2, (Cout, Cin, KSIZE, KSIZE),
                                jnp.float32, -bound, bound)
    conv_b = jax.random.uniform(k3, (Cout,), jnp.float32, -bound, bound)

    y = conv_block_forward(x, gamma, beta, conv_w, conv_b, h_tile=8)
    jax.block_until_ready(y)

    y_ref = reference(x, gamma, beta, conv_w, conv_b)
    assert y.shape == (N, Cout, H, W)
    # bf16 activations / bf16 MXU operands (f32 accumulation) -> relaxed tolerance.
    np.testing.assert_allclose(np.asarray(y), np.asarray(y_ref),
                               rtol=1e-2, atol=1e-2)
    print("KERNEL_OK")
</pallas_src>

<mosaic_0001>
module attributes {stable_mosaic.version = 11 : i64} {
  func.func @bn_stats_kernel(%arg0: i32, %arg1: i32, %arg2: memref<1x1x14x128xbf16, #tpu.memory_space<vmem>>, %arg3: memref<2x128xf32, #tpu.memory_space<vmem>>) attributes {dimension_semantics = [#tpu.dimension_semantics<arbitrary>, #tpu.dimension_semantics<arbitrary>], iteration_bounds = array<i64: 2, 2>, scalar_prefetch = 0 : i64, scratch_operands = 0 : i64, tpu.core_type = #tpu.core_type<tc>, window_params = [{transform_indices = @transform_0, window_bounds = array<i64: 1, 1, 14, 128>}, {pipeline_mode = #tpu.pipeline_mode<synchronous>, transform_indices = @transform_1, window_bounds = array<i64: 2, 128>}]} {
    %c0_i32 = arith.constant 0 : i32
    %0 = arith.cmpi eq, %arg0, %c0_i32 : i32
    %c0_i32_0 = arith.constant 0 : i32
    %1 = arith.cmpi eq, %arg1, %c0_i32_0 : i32
    %2 = arith.andi %0, %1 : i1
    %3 = arith.extui %2 : i1 to i32
    %c0_i32_1 = arith.constant 0 : i32
    %4 = arith.cmpi ne, %3, %c0_i32_1 : i32
    scf.if %4 {
      %cst_9 = arith.constant 0.000000e+00 : f32
      %17 = vector.broadcast %cst_9 : f32 to vector<2x128xf32>
      %c0_10 = arith.constant 0 : index
      %c0_11 = arith.constant 0 : index
      %18 = vector.load %arg3[%c0_10, %c0_11] : memref<2x128xf32, #tpu.memory_space<vmem>>, vector<2x128xf32>
      tpu.vector_store %arg3[%c0_10, %c0_11], %17 {strides = array<i32>} : memref<2x128xf32, #tpu.memory_space<vmem>>, vector<2x128xf32>,
    } else {
    }
    %c0 = arith.constant 0 : index
    %c0_2 = arith.constant 0 : index
    %c3 = arith.constant 3 : index
    %c0_3 = arith.constant 0 : index
    %5 = vector.load %arg2[%c0, %c0_2, %c3, %c0_3] : memref<1x1x14x128xbf16, #tpu.memory_space<vmem>>, vector<1x1x8x128xbf16>
    %6 = vector.shape_cast %5 : vector<1x1x8x128xbf16> to vector<8x128xbf16>
    %7 = arith.extf %6 : vector<8x128xbf16> to vector<8x128xf32>
    %cst = arith.constant dense<0.000000e+00> : vector<128xf32>
    %8 = vector.multi_reduction <add>, %7, %cst [0] : vector<8x128xf32> to vector<128xf32>
    %9 = vector.shape_cast %8 : vector<128xf32> to vector<1x128xf32>
    %10 = arith.mulf %7, %7 : vector<8x128xf32>
    %cst_4 = arith.constant dense<0.000000e+00> : vector<128xf32>
    %11 = vector.multi_reduction <add>, %10, %cst_4 [0] : vector<8x128xf32> to vector<128xf32>
    %12 = vector.shape_cast %11 : vector<128xf32> to vector<1x128xf32>
    %c0_5 = arith.constant 0 : index
    %c0_6 = arith.constant 0 : index
    %13 = vector.load %arg3[%c0_5, %c0_6] : memref<2x128xf32, #tpu.memory_space<vmem>>, vector<2x128xf32>
    %14 = tpu.concatenate %9, %12 in 0 : vector<1x128xf32>, vector<1x128xf32> -> vector<2x128xf32>
    %15 = arith.addf %13, %14 : vector<2x128xf32>
    %c0_7 = arith.constant 0 : index
    %c0_8 = arith.constant 0 : index
    %16 = vector.load %arg3[%c0_7, %c0_8] : memref<2x128xf32, #tpu.memory_space<vmem>>, vector<2x128xf32>
    tpu.vector_store %arg3[%c0_7, %c0_8], %15 {strides = array<i32>} : memref<2x128xf32, #tpu.memory_space<vmem>>, vector<2x128xf32>,
    return
  }
  func.func @transform_0(%arg0: i32, %arg1: i32) -> (i32, i32, i32, i32) {
    %c0_i32 = arith.constant 0 : i32
    %c0_i32_0 = arith.constant 0 : i32
    %c0_i32_1 = arith.constant 0 : i32
    return %arg0, %arg1, %c0_i32, %c0_i32_0 : i32, i32, i32, i32
  }
  func.func @transform_1(%arg0: i32, %arg1: i32) -> (i32, i32) {
    %c0_i32 = arith.constant 0 : i32
    %c0_i32_0 = arith.constant 0 : i32
    %c0_i32_1 = arith.constant 0 : i32
    return %c0_i32, %c0_i32_0 : i32, i32
  }
}

</mosaic_0001>

<llo_original>
// kernel: tpu_custom_call.1
$region0: #{tpu_custom_call.1}
  #allocation0 [shape = 'u32[]', space=smem, size = 0x4, offset = 0x4, fixed_abs, tag = 'smem constant byte address 0x4 - core index']
  #allocation1 [shape = 'u32[72,128]{1,0:T(1,128)}', space=vmem, size = 0x9000, scoped, tag = 'internal scratch']
  %s0 = inlined_call_operand.vmem [shape: bf16[2,2,14,128], index: 0, kind: input, shape index: {}]
  %s1 = inlined_call_operand.hbm [shape: f32[2,128], index: 1, kind: output, shape index: {}]
  %s2 = sld [smem:[#allocation0]]
  $region41: #{tpu_custom_call.1} parent=0
    _
  %s4 = ssub.s32 1, %s2
  %s5 = scalar_select 0, %s4, %s2
  $region1: #{tpu_custom_call.1} parent=0
    #allocation2 [shape = 'u8[1024]{0}', space=vmem, size = 0x400, scoped, tag = 'output window, operand 0, single buffered']
    #allocation3 [shape = 's32[2]{0}', space=sflag, size = 0x8, scoped, tag = 'scoped memory for tpu_custom_call.1']
    %6 = vsyncpa [#allocation3], 0
    loop: start=0, step=1, limit=6
    $region2: #{tpu_custom_call.1} parent=1 // loop_pre_header
      _
    $region3: #{tpu_custom_call.1} parent=1 // loop_header
      %s8 = sphi 0, %s12
      %p9 = scmp.ge.s32.totalorder %s8, 6
      %s15 = sphi 0, %s27
      %s16 = sphi 0, %s23
      %s17 = sphi 0, %s15
      %s18 = sphi 0, %s16
      %s19 = sphi 0, %s17
      %s20 = sphi 0, %s18
      %s32 = sphi 0, %s34
      %s35 = sphi 0, %s32
      %s36 = sphi 0, %s35
      %s52 = sphi 0, %s36
      %s56 = sphi 0, %s56
      %s58 = sphi 0, %s56
      %s59 = sphi 0, %s58
      %s73 = sphi 0, %s59
    $region4: #{tpu_custom_call.1} parent=1 // loop_header_branch
      %11 = sbr.rel (%p9) target = $region8
    $region5: #{tpu_custom_call.1} parent=1 // loop_body
      %s13 = ssub.s32 %s8, 1
      %s14 = ssub.s32 %s8, 2
      %s21 = sadd.s32 1, %s16
      %p22 = scmp.ge.s32.totalorder %s21, 2
      %s23 = scalar_select %p22, 0, %s21
      %s24 = sadd.s32 1, %s15
      %s25 = scalar_select %p22, %s24, %s15
      %p26 = scmp.ge.s32.totalorder %s25, 2
      %s27 = scalar_select %p26, 0, %s25
      %s28 = ssub.s32 %s15, %s27
      %s29 = ssub.s32 %s16, %s23
      %s30 = sor.u32 %s28, %s29
      %p31 = scmp.eq.s32.totalorder %s30, 0
      %s33 = sadd.s32 %s32, 1
      %s34 = scalar_select %p31, %s32, %s33
      %p37 = pneg %p31
      %p38 = scmp.eq.s32.totalorder %s8, 3
      %p39 = por %p37, %p38
      %p40 = scmp.ne.s32.totalorder %s32, %s35
      %p41 = scmp.eq.s32.totalorder %s8, 0
      %p42 = por %p40, %p41
      %p43 = scmp.ne.s32.totalorder %s32, %s35
      %p44 = scmp.eq.s32.totalorder %s13, 3
      %p45 = por %p43, %p44
      %p46 = scmp.ne.s32.totalorder %s35, %s36
      %p47 = scmp.eq.s32.totalorder %s13, 0
      %p48 = por %p46, %p47
      %p49 = scmp.ne.s32.totalorder %s35, %s36
      %p50 = scmp.eq.s32.totalorder %s14, 3
      %p51 = por %p49, %p50
      %p53 = scmp.ne.s32.totalorder %s36, %s52
      %p54 = scmp.eq.s32.totalorder %s14, 0
      %p55 = por %p53, %p54
      %s57 = sadd.s32 %s56, 1
      %p60 = scmp.eq.s32.totalorder %s8, 3
      %p61 = scmp.ne.s32.totalorder %s56, %s58
      %p62 = scmp.eq.s32.totalorder %s8, 0
      %p63 = por %p61, %p62
      %p64 = scmp.ne.s32.totalorder %s56, %s58
      %p65 = scmp.eq.s32.totalorder %s13, 3
      %p66 = por %p64, %p65
      %p67 = scmp.ne.s32.totalorder %s58, %s59
      %p68 = scmp.eq.s32.totalorder %s13, 0
      %p69 = por %p67, %p68
      %p70 = scmp.ne.s32.totalorder %s58, %s59
      %p71 = scmp.eq.s32.totalorder %s14, 3
      %p72 = por %p70, %p71
      %p74 = scmp.ne.s32.totalorder %s59, %s73
      %p75 = scmp.eq.s32.totalorder %s14, 0
      %p76 = por %p74, %p75
      %p77 = scmp.le.s32.totalorder 1, %s8
      %p78 = scmp.lt.s32.totalorder %s8, 5
      %p79 = pnand %p77, %p78
      %p80 = pneg %p79
      // Predicated region
      $region9: #{tpu_custom_call.1} parent=5 // pred_check
        _
      $region10: #{tpu_custom_call.1} parent=5 // pred_check_branch
        %82 = sbr.rel (%p79) target = $region12
      $region11: #{tpu_custom_call.1} parent=5 // pred_region
        %s83 = ssub.s32 %s8, 1
      $region12: #{tpu_custom_call.1} parent=5 // pred_fallthru
        _
      %p84 = scmp.lt.s32.totalorder %s8, 4
      // Predicated region
      $region13: #{tpu_custom_call.1} parent=5 // pred_check
        %p85 = pneg %p84
      $region14: #{tpu_custom_call.1} parent=5 // pred_check_branch
        %87 = sbr.rel (%p85) target = $region16
      $region15: #{tpu_custom_call.1} parent=5 // pred_region
        // Predicated region
        $region17: #{tpu_custom_call.1} parent=15 // pred_check
          %p88 = pneg %p42
        $region18: #{tpu_custom_call.1} parent=15 // pred_check_branch
          %90 = sbr.rel (%p88) target = $region20
        $region19: #{tpu_custom_call.1} parent=15 // pred_region
          %p91 = scmp.lt.s32.totalorder %s15, 1
          %s92 = scalar_select %p91, %s15, 1
          %p93 = scmp.lt.s32.totalorder %s16, 1
          %s94 = scalar_select %p93, %s16, 1
          %s95 = smul.addr %s94, 2
          %s96 = smul.addr %s92, 4
          %s97 = sadd.s32 %s95, %s96
          %s98 = smul.addr %s97, 4
          %s99 = scalar_lea.vmem %s0, %s98
        $region20: #{tpu_custom_call.1} parent=15 // pred_fallthru
          _
      $region16: #{tpu_custom_call.1} parent=5 // pred_fallthru
        _
      %p100 = scmp.le.s32.totalorder 1, %s8
      %p101 = scmp.lt.s32.totalorder %s8, 5
      %p102 = pnand %p100, %p101
      %p103 = pneg %p102
      // Predicated region
      $region21: #{tpu_custom_call.1} parent=5 // pred_check
        _
      $region22: #{tpu_custom_call.1} parent=5 // pred_check_branch
        %105 = sbr.rel (%p102) target = $region24
      $region23: #{tpu_custom_call.1} parent=5 // pred_region
        %s106 = ssub.s32 %s8, 1
        %p107 = scmp.lt.s32.totalorder %s17, 1
        %s108 = scalar_select %p107, %s17, 1
        %p109 = scmp.lt.s32.totalorder %s18, 1
        %s110 = scalar_select %p109, %s18, 1
        %s111 = smul.addr %s110, 2
        %s112 = smul.addr %s108, 4
        %s113 = sadd.s32 %s111, %s112
        %s114 = smul.addr %s113, 4
        %s115 = scalar_lea.vmem %s0, %s114
        %p116 = pneg %p48
        %p117 = pneg %p45
        %p118 = pneg %p69
        %p119 = pneg %p66
        %p120 = scmp.lt.s32.totalorder %s17, 1
        %s121 = scalar_select %p120, %s17, 1
        %p122 = scmp.lt.s32.totalorder %s18, 1
        %s123 = scalar_select %p122, %s18, 1
        %s124 = smul.addr %s123, 2
        %s125 = smul.addr %s121, 4
        %s126 = sadd.s32 %s124, %s125
        %s127 = smul.addr %s126, 4
        %s128 = scalar_lea.vmem %s0, %s127
        %p129 = scmp.eq.s32.totalorder %s17, 0
        %p130 = scmp.eq.s32.totalorder %s18, 0
        %p131 = pnand %p129, %p130
        %p132 = pneg %p131
        // Predicated region
        $region25: #{tpu_custom_call.1} parent=23 // pred_check
          _
        $region26: #{tpu_custom_call.1} parent=23 // pred_check_branch
          %134 = sbr.rel (%p131) target = $region28
        $region27: #{tpu_custom_call.1} parent=23 // pred_region
          %135 = vst [vmem:[#allocation2] sm:$0x3] 0.0
        $region28: #{tpu_custom_call.1} parent=23 // pred_fallthru
          _
        %v136 = vld [vmem:[%s128] sm:$0xe]
        %v137 = vld [vmem:[%s128 + $0x4] sm:$0x3]
        %v138 = vunpack.c.l.bf16 %v136
        %v139 = vunpack.c.l.bf16 %v137
        %vm142 = vcmask 1044480
        %v143 = vrot.slane %v138, 3
        %v144 = vrot.slane %v139, 3
        %v145 = vsel %vm142, %v143, %v144
        %v147 = vrot.slane %v145, 4
        %v148 = vadd.f32 %v145, %v147
        %v149 = vrot.slane %v148, 2
        %v150 = vadd.f32 %v148, %v149
        %v151 = vrot.slane %v150, 1
        %v152 = vadd.f32 %v150, %v151
        %v153 = vmul.f32 %v138, %v138
        %v154 = vmul.f32 %v139, %v139
        %v157 = vrot.slane %v153, 3
        %v158 = vrot.slane %v154, 3
        %v159 = vsel %vm142, %v157, %v158
        %v161 = vrot.slane %v159, 4
        %v162 = vadd.f32 %v159, %v161
        %v163 = vrot.slane %v162, 2
        %v164 = vadd.f32 %v162, %v163
        %v165 = vrot.slane %v164, 1
        %v166 = vadd.f32 %v164, %v165
        %v167 = vld [vmem:[#allocation2] sm:$0x3]
        %vm168 = vcmask 1040384
        %v169 = vsel %vm168, %v152, %v166
        %v170 = vadd.f32 %v167, %v169
        %171 = vst [vmem:[#allocation2] sm:$0x3] %v170
        // Predicated region
        $region29: #{tpu_custom_call.1} parent=23 // pred_check
          %p172 = pneg %p66
        $region30: #{tpu_custom_call.1} parent=23 // pred_check_branch
          %174 = sbr.rel (%p172) target = $region32
        $region31: #{tpu_custom_call.1} parent=23 // pred_region
          %176 = vsyncadd [#allocation3], 0
          %s178 = sshll.u32 [#allocation2], 4
          %s179 = int_to_ptr.vmem [resolvable:$true] %s178
          %s180 = sshll.u32 %s1, 4
          %s181 = int_to_ptr.hbm [resolvable:$true] %s180
          %183 = dma.vmem_to_hbm [thread:$0]  %s179, 32, %s181, [#allocation3]
        $region32: #{tpu_custom_call.1} parent=23 // pred_fallthru
          _
        // Predicated region
        $region33: #{tpu_custom_call.1} parent=23 // pred_check
          %p184 = pneg %p66
        $region34: #{tpu_custom_call.1} parent=23 // pred_check_branch
          %186 = sbr.rel (%p184) target = $region36
        $region35: #{tpu_custom_call.1} parent=23 // pred_region
          %188 = dma.done [#allocation3], 32
        $region36: #{tpu_custom_call.1} parent=23 // pred_fallthru
          _
      $region24: #{tpu_custom_call.1} parent=5 // pred_fallthru
        _
      %p189 = scmp.le.s32.totalorder 2, %s8
      // Predicated region
      $region37: #{tpu_custom_call.1} parent=5 // pred_check
        %p190 = pneg %p189
      $region38: #{tpu_custom_call.1} parent=5 // pred_check_branch
        %192 = sbr.rel (%p190) target = $region40
      $region39: #{tpu_custom_call.1} parent=5 // pred_region
        %s193 = ssub.s32 %s8, 2
      $region40: #{tpu_custom_call.1} parent=5 // pred_fallthru
        _
    $region6: #{tpu_custom_call.1} parent=1 // loop_footer
      %s12 = sadd.s32 1, %s8
    $region7: #{tpu_custom_call.1} parent=1 // loop_footer_branch
      %7 = sbr.rel target = $region3
    $region8: #{tpu_custom_call.1} parent=1 // loop_exit
      _
    %194 = vsyncpa [#allocation3], 1
    %s195 = scalar_lea.sflag [#allocation3], 1
    %196 = vsyncpa %s195, 1

</llo_original>
